<compile_context>
chip_gen: v6e
topology: v6e:2x2x1
jax: 0.10.0
libtpu: 0.0.40
codegen_flags: <defaults>
</compile_context>

<pallas_src>
import jax
import jax.numpy as jnp
from jax import lax
from jax.experimental import pallas as pl
from jax.experimental.pallas import tpu as pltpu


def _embeddings_kernel(eidx_ref, iidx_ref,           # scalar-prefetch indices (SMEM)
                       exp_row_ref, id_row_ref,      # gathered table rows (VMEM)
                       vexp_in_ref, vid_in_ref,      # current valid masks (SMEM)
                       exp_out_ref, id_out_ref,      # output embedding rows (VMEM)
                       vexp_out_ref, vid_out_ref):   # updated valid masks (SMEM)
    b = pl.program_id(0)

    # Carry previously-set valid bits into the outputs once (scalar SMEM copy).
    # TODO(synk): for very large vocabularies, fold this merge into the wrapper
    # (kernel emits a zeroed delta mask) to avoid the O(Ne+Ni) scalar loop.
    @pl.when(b == 0)
    def _init():
        def _copy(dst_ref, src_ref):
            def body(i, c):
                dst_ref[i] = src_ref[i]
                return c
            lax.fori_loop(0, dst_ref.shape[0], body, 0)
        _copy(vexp_out_ref, vexp_in_ref)
        _copy(vid_out_ref, vid_in_ref)

    # Exact gather: the index-driven BlockSpec already DMA'd exactly the row we
    # need from HBM into VMEM; copy it to this batch element's output tile.
    exp_out_ref[...] = exp_row_ref[...]
    id_out_ref[...] = id_row_ref[...]

    # valid_exp[exp_idx] = 1 ; valid_id[id_idx] = 1   (scalar SMEM scatter).
    vexp_out_ref[eidx_ref[b]] = jnp.int32(1)
    vid_out_ref[iidx_ref[b]] = jnp.int32(1)


def embeddings_forward(exp_infor, id_infor, exp_table, id_table,
                       valid_exp, valid_id, id_num):
    """Pallas equivalent of Embeddings.forward(exp_infor, id_infor) for integer
    index inputs with extend=True.

    Returns (exp_code, id_code, new_valid_exp, new_valid_id); the valid masks
    are returned (functional update) instead of mutated in place."""
    B = exp_infor.shape[0]
    Ne, exp_dim = exp_table.shape
    Ni, id_dim = id_table.shape

    # Precompute the extended exp index in the wrapper and clamp both index
    # arrays so an out-of-range index can never make the row-gather DMA read
    # outside its table.
    id_idx = jnp.clip(id_infor.astype(jnp.int32).reshape(B), 0, Ni - 1)
    ext_idx = jnp.clip(exp_infor.astype(jnp.int32).reshape(B) * id_num + id_idx,
                       0, Ne - 1)

    # Free unit-dim reshape so each gathered row is a (1, 1, dim) block whose
    # trailing dims equal the full array dims (native width, no per-call pad).
    exp_t3 = exp_table.reshape(Ne, 1, exp_dim)
    id_t3 = id_table.reshape(Ni, 1, id_dim)

    exp3, id3, new_vexp, new_vid = pl.pallas_call(
        _embeddings_kernel,
        out_shape=(
            jax.ShapeDtypeStruct((B, 1, exp_dim), exp_table.dtype),
            jax.ShapeDtypeStruct((B, 1, id_dim), id_table.dtype),
            jax.ShapeDtypeStruct((Ne,), jnp.int32),
            jax.ShapeDtypeStruct((Ni,), jnp.int32),
        ),
        grid_spec=pltpu.PrefetchScalarGridSpec(
            num_scalar_prefetch=2,
            grid=(B,),
            in_specs=[
                # Index-driven row gather: only row ext_idx[b] / id_idx[b] is
                # DMA'd per grid step (double-buffered by the pipeline), so the
                # tables stay in HBM and never occupy table-sized VMEM.
                pl.BlockSpec((1, 1, exp_dim),
                             lambda b, eidx, iidx: (eidx[b], 0, 0)),
                pl.BlockSpec((1, 1, id_dim),
                             lambda b, eidx, iidx: (iidx[b], 0, 0)),
                # valid masks stay in SMEM (scalar scatter targets).
                pl.BlockSpec(memory_space=pltpu.MemorySpace.SMEM),
                pl.BlockSpec(memory_space=pltpu.MemorySpace.SMEM),
            ],
            out_specs=(
                pl.BlockSpec((1, 1, exp_dim), lambda b, eidx, iidx: (b, 0, 0)),
                pl.BlockSpec((1, 1, id_dim), lambda b, eidx, iidx: (b, 0, 0)),
                pl.BlockSpec(memory_space=pltpu.MemorySpace.SMEM),
                pl.BlockSpec(memory_space=pltpu.MemorySpace.SMEM),
            ),
        ),
        compiler_params=pltpu.CompilerParams(
            # Mask scatters accumulate across the batch axis -> keep it serial.
            # TODO(synk): on v7x (2 TCs) emit per-core mask partials and OR them
            # in the wrapper so this axis can be marked "parallel".
            dimension_semantics=("arbitrary",),
        ),
    )(ext_idx, id_idx, exp_t3, id_t3, valid_exp, valid_id)

    exp_code = exp3.reshape(B, exp_dim)
    id_code = id3.reshape(B, id_dim)
    return exp_code, id_code, new_vexp, new_vid


if __name__ == "__main__":
    # module hyper-params (small, consistent with __init__)
    id_num, exp_num = 8, 4
    id_dim, exp_dim = 32, 32
    initial_std = 0.01
    B = 8  # batch of index pairs

    key = jax.random.PRNGKey(0)
    k_id, k_exp, k_iid, k_iexp = jax.random.split(key, 4)

    # deterministic parameter init: normal(mean=0, std=initial_std), as in __init__
    id_table = initial_std * jax.random.normal(k_id, (id_num, id_dim), dtype=jnp.float32)
    exp_table = initial_std * jax.random.normal(k_exp, (id_num * exp_num, exp_dim),
                                                dtype=jnp.float32)
    # registered buffers (torch keeps them int64; int32 is the TPU-native width).
    # Pre-set a couple of bits to exercise carry-over of previously-valid entries.
    valid_id = jnp.zeros((id_num,), dtype=jnp.int32).at[0].set(1)
    valid_exp = jnp.zeros((id_num * exp_num,), dtype=jnp.int32).at[3].set(1)

    # example integer inputs (the forward's index path)
    id_infor = jax.random.randint(k_iid, (B,), 0, id_num, dtype=jnp.int32)
    exp_infor = jax.random.randint(k_iexp, (B,), 0, exp_num, dtype=jnp.int32)

    exp_code, id_code, new_valid_exp, new_valid_id = jax.block_until_ready(
        embeddings_forward(exp_infor, id_infor, exp_table, id_table,
                           valid_exp, valid_id, id_num))

    # pure-JAX reference check of the forward semantics
    exp_idx_ref = exp_infor * id_num + id_infor
    ref_exp = exp_table[exp_idx_ref]
    ref_id = id_table[id_infor]
    assert exp_code.shape == (B, exp_dim) and id_code.shape == (B, id_dim)
    assert jnp.allclose(exp_code, ref_exp)
    assert jnp.allclose(id_code, ref_id)
    ref_valid_exp = valid_exp.at[exp_idx_ref].set(1)
    ref_valid_id = valid_id.at[id_infor].set(1)
    assert bool(jnp.all(new_valid_exp == ref_valid_exp))
    assert bool(jnp.all(new_valid_id == ref_valid_id))

    # TODO(synk): the None / float-tensor pass-through branches of forward are
    # pure Python control flow with no compute; they are handled outside the kernel.
    print("KERNEL_OK")
</pallas_src>

<mosaic_0001>
module attributes {stable_mosaic.version = 11 : i64} {
  func.func @_embeddings_kernel(%arg0: i32, %arg1: memref<8xi32, #tpu.memory_space<smem>>, %arg2: memref<8xi32, #tpu.memory_space<smem>>, %arg3: memref<1x1x32xf32, #tpu.memory_space<vmem>>, %arg4: memref<1x1x32xf32, #tpu.memory_space<vmem>>, %arg5: memref<32xi32, #tpu.memory_space<smem>>, %arg6: memref<8xi32, #tpu.memory_space<smem>>, %arg7: memref<1x1x32xf32, #tpu.memory_space<vmem>>, %arg8: memref<1x1x32xf32, #tpu.memory_space<vmem>>, %arg9: memref<32xi32, #tpu.memory_space<smem>>, %arg10: memref<8xi32, #tpu.memory_space<smem>>) attributes {dimension_semantics = [#tpu.dimension_semantics<arbitrary>], iteration_bounds = array<i64: 8>, scalar_prefetch = 2 : i64, scratch_operands = 0 : i64, tpu.core_type = #tpu.core_type<tc>, window_params = [{transform_indices = @transform_0, window_bounds = array<i64: 1, 1, 32>}, {transform_indices = @transform_1, window_bounds = array<i64: 1, 1, 32>}, {transform_indices = @transform_2, window_bounds = array<i64: 32>}, {transform_indices = @transform_3, window_bounds = array<i64: 8>}, {transform_indices = @transform_4, window_bounds = array<i64: 1, 1, 32>}, {transform_indices = @transform_5, window_bounds = array<i64: 1, 1, 32>}, {transform_indices = @transform_6, window_bounds = array<i64: 32>}, {transform_indices = @transform_7, window_bounds = array<i64: 8>}]} {
    %c0_i32 = arith.constant 0 : i32
    %0 = arith.cmpi eq, %arg0, %c0_i32 : i32
    %1 = arith.extui %0 : i1 to i32
    %c0_i32_0 = arith.constant 0 : i32
    %2 = arith.cmpi ne, %1, %c0_i32_0 : i32
    scf.if %2 {
      %c0_i32_13 = arith.constant 0 : i32
      %c32_i32 = arith.constant 32 : i32
      %15 = arith.addi %c0_i32_13, %c32_i32 : i32
      %c1_i32_14 = arith.constant 1 : i32
      scf.for %arg11 = %c0_i32_13 to %15 step %c1_i32_14  : i32 {
        %17 = arith.index_cast %arg11 : i32 to index
        %18 = memref.load %arg5[%17] : memref<32xi32, #tpu.memory_space<smem>>
        %19 = arith.index_cast %arg11 : i32 to index
        %20 = memref.load %arg9[%19] : memref<32xi32, #tpu.memory_space<smem>>
        memref.store %18, %arg9[%19] : memref<32xi32, #tpu.memory_space<smem>>
      }
      %c32_i32_15 = arith.constant 32 : i32
      %c0_i32_16 = arith.constant 0 : i32
      %c8_i32 = arith.constant 8 : i32
      %16 = arith.addi %c0_i32_16, %c8_i32 : i32
      %c1_i32_17 = arith.constant 1 : i32
      scf.for %arg11 = %c0_i32_16 to %16 step %c1_i32_17  : i32 {
        %17 = arith.index_cast %arg11 : i32 to index
        %18 = memref.load %arg6[%17] : memref<8xi32, #tpu.memory_space<smem>>
        %19 = arith.index_cast %arg11 : i32 to index
        %20 = memref.load %arg10[%19] : memref<8xi32, #tpu.memory_space<smem>>
        memref.store %18, %arg10[%19] : memref<8xi32, #tpu.memory_space<smem>>
      }
      %c8_i32_18 = arith.constant 8 : i32
    } else {
    }
    %c0 = arith.constant 0 : index
    %c0_1 = arith.constant 0 : index
    %c0_2 = arith.constant 0 : index
    %3 = vector.load %arg3[%c0, %c0_1, %c0_2] : memref<1x1x32xf32, #tpu.memory_space<vmem>>, vector<1x1x32xf32>
    %c0_3 = arith.constant 0 : index
    %c0_4 = arith.constant 0 : index
    %c0_5 = arith.constant 0 : index
    %4 = vector.load %arg7[%c0_3, %c0_4, %c0_5] : memref<1x1x32xf32, #tpu.memory_space<vmem>>, vector<1x1x32xf32>
    tpu.vector_store %arg7[%c0_3, %c0_4, %c0_5], %3 {strides = array<i32>} : memref<1x1x32xf32, #tpu.memory_space<vmem>>, vector<1x1x32xf32>,
    %c0_6 = arith.constant 0 : index
    %c0_7 = arith.constant 0 : index
    %c0_8 = arith.constant 0 : index
    %5 = vector.load %arg4[%c0_6, %c0_7, %c0_8] : memref<1x1x32xf32, #tpu.memory_space<vmem>>, vector<1x1x32xf32>
    %c0_9 = arith.constant 0 : index
    %c0_10 = arith.constant 0 : index
    %c0_11 = arith.constant 0 : index
    %6 = vector.load %arg8[%c0_9, %c0_10, %c0_11] : memref<1x1x32xf32, #tpu.memory_space<vmem>>, vector<1x1x32xf32>
    tpu.vector_store %arg8[%c0_9, %c0_10, %c0_11], %5 {strides = array<i32>} : memref<1x1x32xf32, #tpu.memory_space<vmem>>, vector<1x1x32xf32>,
    %7 = arith.index_cast %arg0 : i32 to index
    %8 = memref.load %arg1[%7] : memref<8xi32, #tpu.memory_space<smem>>
    %c1_i32 = arith.constant 1 : i32
    %9 = arith.index_cast %8 : i32 to index
    %10 = memref.load %arg9[%9] : memref<32xi32, #tpu.memory_space<smem>>
    memref.store %c1_i32, %arg9[%9] : memref<32xi32, #tpu.memory_space<smem>>
    %11 = arith.index_cast %arg0 : i32 to index
    %12 = memref.load %arg2[%11] : memref<8xi32, #tpu.memory_space<smem>>
    %c1_i32_12 = arith.constant 1 : i32
    %13 = arith.index_cast %12 : i32 to index
    %14 = memref.load %arg10[%13] : memref<8xi32, #tpu.memory_space<smem>>
    memref.store %c1_i32_12, %arg10[%13] : memref<8xi32, #tpu.memory_space<smem>>
    return
  }
  func.func @transform_0(%arg0: i32, %arg1: memref<8xi32, #tpu.memory_space<smem>>, %arg2: memref<8xi32, #tpu.memory_space<smem>>) -> (i32, i32, i32) {
    %0 = arith.index_cast %arg0 : i32 to index
    %1 = memref.load %arg1[%0] : memref<8xi32, #tpu.memory_space<smem>>
    %c0_i32 = arith.constant 0 : i32
    %c0_i32_0 = arith.constant 0 : i32
    %c0_i32_1 = arith.constant 0 : i32
    return %1, %c0_i32, %c0_i32_0 : i32, i32, i32
  }
  func.func @transform_1(%arg0: i32, %arg1: memref<8xi32, #tpu.memory_space<smem>>, %arg2: memref<8xi32, #tpu.memory_space<smem>>) -> (i32, i32, i32) {
    %0 = arith.index_cast %arg0 : i32 to index
    %1 = memref.load %arg2[%0] : memref<8xi32, #tpu.memory_space<smem>>
    %c0_i32 = arith.constant 0 : i32
    %c0_i32_0 = arith.constant 0 : i32
    %c0_i32_1 = arith.constant 0 : i32
    return %1, %c0_i32, %c0_i32_0 : i32, i32, i32
  }
  func.func @transform_2(%arg0: i32, %arg1: memref<8xi32, #tpu.memory_space<smem>>, %arg2: memref<8xi32, #tpu.memory_space<smem>>) -> i32 {
    %c0_i32 = arith.constant 0 : i32
    %c0_i32_0 = arith.constant 0 : i32
    return %c0_i32 : i32
  }
  func.func @transform_3(%arg0: i32, %arg1: memref<8xi32, #tpu.memory_space<smem>>, %arg2: memref<8xi32, #tpu.memory_space<smem>>) -> i32 {
    %c0_i32 = arith.constant 0 : i32
    %c0_i32_0 = arith.constant 0 : i32
    return %c0_i32 : i32
  }
  func.func @transform_4(%arg0: i32, %arg1: memref<8xi32, #tpu.memory_space<smem>>, %arg2: memref<8xi32, #tpu.memory_space<smem>>) -> (i32, i32, i32) {
    %c0_i32 = arith.constant 0 : i32
    %c0_i32_0 = arith.constant 0 : i32
    %c0_i32_1 = arith.constant 0 : i32
    return %arg0, %c0_i32, %c0_i32_0 : i32, i32, i32
  }
  func.func @transform_5(%arg0: i32, %arg1: memref<8xi32, #tpu.memory_space<smem>>, %arg2: memref<8xi32, #tpu.memory_space<smem>>) -> (i32, i32, i32) {
    %c0_i32 = arith.constant 0 : i32
    %c0_i32_0 = arith.constant 0 : i32
    %c0_i32_1 = arith.constant 0 : i32
    return %arg0, %c0_i32, %c0_i32_0 : i32, i32, i32
  }
  func.func @transform_6(%arg0: i32, %arg1: memref<8xi32, #tpu.memory_space<smem>>, %arg2: memref<8xi32, #tpu.memory_space<smem>>) -> i32 {
    %c0_i32 = arith.constant 0 : i32
    %c0_i32_0 = arith.constant 0 : i32
    return %c0_i32 : i32
  }
  func.func @transform_7(%arg0: i32, %arg1: memref<8xi32, #tpu.memory_space<smem>>, %arg2: memref<8xi32, #tpu.memory_space<smem>>) -> i32 {
    %c0_i32 = arith.constant 0 : i32
    %c0_i32_0 = arith.constant 0 : i32
    return %c0_i32 : i32
  }
}

</mosaic_0001>

<llo_original>
// kernel: tpu_custom_call.1
$region0: #{tpu_custom_call.1}
  #allocation0 [shape = 'u32[]', space=smem, size = 0x4, offset = 0x4, fixed_abs, tag = 'smem constant byte address 0x4 - core index']
  #allocation1 [shape = 'u32[144,128]{1,0:T(1,128)}', space=vmem, size = 0x12000, scoped, tag = 'internal scratch']
  #allocation2 [shape = 's32[1]{0}', space=sflag, size = 0x4, scoped, tag = 'scoped memory for tpu_custom_call.1']
  #allocation3 [shape = 'u8[512]{0}', space=smem, size = 0x200, scoped, tag = 'prefetched SMEM operand 0']
  #allocation4 [shape = 'u8[512]{0}', space=smem, size = 0x200, scoped, tag = 'prefetched SMEM operand 1']
  %s0 = inlined_call_operand.hbm [shape: s32[8], index: 0, kind: input, shape index: {}]
  %s1 = inlined_call_operand.vmem [shape: s32[8], index: 1, kind: input, shape index: {}]
  %s2 = inlined_call_operand.hbm [shape: f32[32,1,32], index: 2, kind: input, shape index: {}]
  %s3 = inlined_call_operand.hbm [shape: f32[8,1,32], index: 3, kind: input, shape index: {}]
  %s4 = inlined_call_operand.vmem [shape: s32[32], index: 4, kind: input, shape index: {}]
  %s5 = inlined_call_operand.vmem [shape: s32[8], index: 5, kind: input, shape index: {}]
  %s6 = inlined_call_operand.hbm [shape: f32[8,1,32], index: 6, kind: output, shape index: {0}]
  %s7 = inlined_call_operand.hbm [shape: f32[8,1,32], index: 7, kind: output, shape index: {1}]
  %s8 = inlined_call_operand.hbm [shape: s32[32], index: 8, kind: output, shape index: {2}]
  %s9 = inlined_call_operand.hbm [shape: s32[8], index: 9, kind: output, shape index: {3}]
  %10 = xla_tuple %s6, %s7, %s8, %s9
  %s11 = sld [smem:[#allocation0]]
  $region107: #{tpu_custom_call.1} parent=0
    _
  %s13 = ssub.s32 1, %s11
  %s14 = scalar_select 0, %s13, %s11
  %16 = dma.hbm_to_smem %s0, 16, [#allocation3], [#allocation2]
  %s17 = sshll.u32 %s1, 4
  %s18 = int_to_ptr.vmem [resolvable:$true] %s17
  %20 = dma.vmem_to_smem %s18, 16, [#allocation4], [#allocation2]
  %21 = dma.done [#allocation2], 32
  %22 = sfence
  $region1: #{tpu_custom_call.1} parent=0
    #allocation5 [shape = 'u8[1024]{0}', space=vmem, size = 0x400, scoped, tag = 'input window, operand 2']
    #allocation6 [shape = 's32[2]{0}', space=sflag, size = 0x8, scoped, tag = 'scoped memory for tpu_custom_call.1']
    #allocation7 [shape = 's32[2]{0}', space=sflag, size = 0x8, scoped, tag = 'scoped memory for tpu_custom_call.1']
    #allocation8 [shape = 's32[2]{0}', space=sflag, size = 0x8, scoped, tag = 'scoped memory for tpu_custom_call.1']
    #allocation9 [shape = 's32[2]{0}', space=sflag, size = 0x8, scoped, tag = 'scoped memory for tpu_custom_call.1']
    #allocation10 [shape = 'u8[1024]{0}', space=vmem, size = 0x400, scoped, tag = 'input window, operand 3']
    #allocation11 [shape = 's32[2]{0}', space=sflag, size = 0x8, scoped, tag = 'scoped memory for tpu_custom_call.1']
    #allocation12 [shape = 'u8[512]{0}', space=smem, size = 0x200, scoped, tag = 'input window, operand 4, single buffered']
    #allocation13 [shape = 'u8[512]{0}', space=smem, size = 0x200, scoped, tag = 'input window, operand 5, single buffered']
    #allocation14 [shape = 's32[1]{0}', space=sflag, size = 0x4, scoped, tag = 'scoped memory for tpu_custom_call.1']
    #allocation15 [shape = 'u8[1024]{0}', space=vmem, size = 0x400, scoped, tag = 'output window, operand 0']
    #allocation16 [shape = 'u8[1024]{0}', space=vmem, size = 0x400, scoped, tag = 'output window, operand 1']
    #allocation17 [shape = 's32[2]{0}', space=sflag, size = 0x8, scoped, tag = 'scoped memory for tpu_custom_call.1']
    #allocation18 [shape = 'u8[512]{0}', space=smem, size = 0x200, scoped, tag = 'output window, operand 2, single buffered']
    #allocation19 [shape = 'u8[512]{0}', space=smem, size = 0x200, scoped, tag = 'output window, operand 3, single buffered']
    #allocation20 [shape = 's32[1]{0}', space=sflag, size = 0x4, scoped, tag = 'scoped memory for tpu_custom_call.1']
    %23 = vsyncpa [#allocation6], 0
    %s24 = scalar_lea.sflag [#allocation6], 1
    %25 = vsyncpa %s24, 0
    %26 = vsyncpa [#allocation11], 0
    %s27 = scalar_lea.sflag [#allocation11], 1
    %28 = vsyncpa %s27, 0
    %29 = vsyncpa [#allocation9], 0
    %30 = vsyncpa [#allocation14], 0
    %31 = vsyncpa [#allocation7], 0
    %s32 = scalar_lea.sflag [#allocation7], 1
    %33 = vsyncpa %s32, 0
    %34 = vsyncpa [#allocation17], 0
    %s35 = scalar_lea.sflag [#allocation17], 1
    %36 = vsyncpa %s35, 0
    %37 = vsyncpa [#allocation8], 0
    %38 = vsyncpa [#allocation20], 0
    loop: start=0, step=1, limit=10
    $region2: #{tpu_custom_call.1} parent=1 // loop_pre_header
      _
    $region3: #{tpu_custom_call.1} parent=1 // loop_header
      %s40 = sphi 0, %s44
      %p41 = scmp.ge.s32.totalorder %s40, 10
      %s52 = sphi 0, %s54
      %s55 = sphi 0, %s52
      %s56 = sphi 0, %s55
      %s72 = sphi 0, %s56
      %s80 = sphi 0, %s82
      %s83 = sphi 0, %s80
      %s84 = sphi 0, %s83
      %s100 = sphi 0, %s84
      %s104 = sphi 0, %s104
      %s106 = sphi 0, %s104
      %s107 = sphi 0, %s106
      %s121 = sphi 0, %s107
      %s125 = sphi 0, %s125
      %s127 = sphi 0, %s125
      %s128 = sphi 0, %s127
      %s142 = sphi 0, %s128
      %s148 = sphi 0, %s150
      %s151 = sphi 0, %s148
      %s152 = sphi 0, %s151
      %s168 = sphi 0, %s152
      %s174 = sphi 0, %s176
      %s177 = sphi 0, %s174
      %s178 = sphi 0, %s177
      %s194 = sphi 0, %s178
      %s198 = sphi 0, %s198
      %s200 = sphi 0, %s198
      %s201 = sphi 0, %s200
      %s215 = sphi 0, %s201
      %s219 = sphi 0, %s219
      %s221 = sphi 0, %s219
      %s222 = sphi 0, %s221
      %s236 = sphi 0, %s222
    $region4: #{tpu_custom_call.1} parent=1 // loop_header_branch
      %43 = sbr.rel (%p41) target = $region8
    $region5: #{tpu_custom_call.1} parent=1 // loop_body
      %s45 = ssub.s32 %s40, 1
      %s46 = ssub.s32 %s40, 2
      %s47 = sadd.s32 %s40, 1
      %s48 = sld [smem:[#allocation3 + %s40]]
      %s49 = sld [smem:[#allocation3 + %s47]]
      %s50 = ssub.s32 %s48, %s49
      %p51 = scmp.eq.s32.totalorder %s50, 0
      %s53 = sadd.s32 %s52, 1
      %s54 = scalar_select %p51, %s52, %s53
      %p57 = pneg %p51
      %p58 = scmp.eq.s32.totalorder %s40, 7
      %p59 = por %p57, %p58
      %p60 = scmp.ne.s32.totalorder %s52, %s55
      %p61 = scmp.eq.s32.totalorder %s40, 0
      %p62 = por %p60, %p61
      %p63 = scmp.ne.s32.totalorder %s52, %s55
      %p64 = scmp.eq.s32.totalorder %s45, 7
      %p65 = por %p63, %p64
      %p66 = scmp.ne.s32.totalorder %s55, %s56
      %p67 = scmp.eq.s32.totalorder %s45, 0
      %p68 = por %p66, %p67
      %p69 = scmp.ne.s32.totalorder %s55, %s56
      %p70 = scmp.eq.s32.totalorder %s46, 7
      %p71 = por %p69, %p70
      %p73 = scmp.ne.s32.totalorder %s56, %s72
      %p74 = scmp.eq.s32.totalorder %s46, 0
      %p75 = por %p73, %p74
      %s76 = sld [smem:[#allocation4 + %s40]]
      %s77 = sld [smem:[#allocation4 + %s47]]
      %s78 = ssub.s32 %s76, %s77
      %p79 = scmp.eq.s32.totalorder %s78, 0
      %s81 = sadd.s32 %s80, 1
      %s82 = scalar_select %p79, %s80, %s81
      %p85 = pneg %p79
      %p86 = scmp.eq.s32.totalorder %s40, 7
      %p87 = por %p85, %p86
      %p88 = scmp.ne.s32.totalorder %s80, %s83
      %p89 = scmp.eq.s32.totalorder %s40, 0
      %p90 = por %p88, %p89
      %p91 = scmp.ne.s32.totalorder %s80, %s83
      %p92 = scmp.eq.s32.totalorder %s45, 7
      %p93 = por %p91, %p92
      %p94 = scmp.ne.s32.totalorder %s83, %s84
      %p95 = scmp.eq.s32.totalorder %s45, 0
      %p96 = por %p94, %p95
      %p97 = scmp.ne.s32.totalorder %s83, %s84
      %p98 = scmp.eq.s32.totalorder %s46, 7
      %p99 = por %p97, %p98
      %p101 = scmp.ne.s32.totalorder %s84, %s100
      %p102 = scmp.eq.s32.totalorder %s46, 0
      %p103 = por %p101, %p102
      %s105 = sadd.s32 %s104, 1
      %p108 = scmp.eq.s32.totalorder %s40, 7
      %p109 = scmp.ne.s32.totalorder %s104, %s106
      %p110 = scmp.eq.s32.totalorder %s40, 0
      %p111 = por %p109, %p110
      %p112 = scmp.ne.s32.totalorder %s104, %s106
      %p113 = scmp.eq.s32.totalorder %s45, 7
      %p114 = por %p112, %p113
      %p115 = scmp.ne.s32.totalorder %s106, %s107
      %p116 = scmp.eq.s32.totalorder %s45, 0
      %p117 = por %p115, %p116
      %p118 = scmp.ne.s32.totalorder %s106, %s107
      %p119 = scmp.eq.s32.totalorder %s46, 7
      %p120 = por %p118, %p119
      %p122 = scmp.ne.s32.totalorder %s107, %s121
      %p123 = scmp.eq.s32.totalorder %s46, 0
      %p124 = por %p122, %p123
      %s126 = sadd.s32 %s125, 1
      %p129 = scmp.eq.s32.totalorder %s40, 7
      %p130 = scmp.ne.s32.totalorder %s125, %s127
      %p131 = scmp.eq.s32.totalorder %s40, 0
      %p132 = por %p130, %p131
      %p133 = scmp.ne.s32.totalorder %s125, %s127
      %p134 = scmp.eq.s32.totalorder %s45, 7
      %p135 = por %p133, %p134
      %p136 = scmp.ne.s32.totalorder %s127, %s128
      %p137 = scmp.eq.s32.totalorder %s45, 0
      %p138 = por %p136, %p137
      %p139 = scmp.ne.s32.totalorder %s127, %s128
      %p140 = scmp.eq.s32.totalorder %s46, 7
      %p141 = por %p139, %p140
      %p143 = scmp.ne.s32.totalorder %s128, %s142
      %p144 = scmp.eq.s32.totalorder %s46, 0
      %p145 = por %p143, %p144
      %s146 = ssub.s32 %s40, %s47
      %p147 = scmp.eq.s32.totalorder %s146, 0
      %s149 = sadd.s32 %s148, 1
      %s150 = scalar_select %p147, %s148, %s149
      %p153 = pneg %p147
      %p154 = scmp.eq.s32.totalorder %s40, 7
      %p155 = por %p153, %p154
      %p156 = scmp.ne.s32.totalorder %s148, %s151
      %p157 = scmp.eq.s32.totalorder %s40, 0
      %p158 = por %p156, %p157
      %p159 = scmp.ne.s32.totalorder %s148, %s151
      %p160 = scmp.eq.s32.totalorder %s45, 7
      %p161 = por %p159, %p160
      %p162 = scmp.ne.s32.totalorder %s151, %s152
      %p163 = scmp.eq.s32.totalorder %s45, 0
      %p164 = por %p162, %p163
      %p165 = scmp.ne.s32.totalorder %s151, %s152
      %p166 = scmp.eq.s32.totalorder %s46, 7
      %p167 = por %p165, %p166
      %p169 = scmp.ne.s32.totalorder %s152, %s168
      %p170 = scmp.eq.s32.totalorder %s46, 0
      %p171 = por %p169, %p170
      %s172 = ssub.s32 %s40, %s47
      %p173 = scmp.eq.s32.totalorder %s172, 0
      %s175 = sadd.s32 %s174, 1
      %s176 = scalar_select %p173, %s174, %s175
      %p179 = pneg %p173
      %p180 = scmp.eq.s32.totalorder %s40, 7
      %p181 = por %p179, %p180
      %p182 = scmp.ne.s32.totalorder %s174, %s177
      %p183 = scmp.eq.s32.totalorder %s40, 0
      %p184 = por %p182, %p183
      %p185 = scmp.ne.s32.totalorder %s174, %s177
      %p186 = scmp.eq.s32.totalorder %s45, 7
      %p187 = por %p185, %p186
      %p188 = scmp.ne.s32.totalorder %s177, %s178
      %p189 = scmp.eq.s32.totalorder %s45, 0
      %p190 = por %p188, %p189
      %p191 = scmp.ne.s32.totalorder %s177, %s178
      %p192 = scmp.eq.s32.totalorder %s46, 7
      %p193 = por %p191, %p192
      %p195 = scmp.ne.s32.totalorder %s178, %s194
      %p196 = scmp.eq.s32.totalorder %s46, 0
      %p197 = por %p195, %p196
      %s199 = sadd.s32 %s198, 1
      %p202 = scmp.eq.s32.totalorder %s40, 7
      %p203 = scmp.ne.s32.totalorder %s198, %s200
      %p204 = scmp.eq.s32.totalorder %s40, 0
      %p205 = por %p203, %p204
      %p206 = scmp.ne.s32.totalorder %s198, %s200
      %p207 = scmp.eq.s32.totalorder %s45, 7
      %p208 = por %p206, %p207
      %p209 = scmp.ne.s32.totalorder %s200, %s201
      %p210 = scmp.eq.s32.totalorder %s45, 0
      %p211 = por %p209, %p210
      %p212 = scmp.ne.s32.totalorder %s200, %s201
      %p213 = scmp.eq.s32.totalorder %s46, 7
      %p214 = por %p212, %p213
      %p216 = scmp.ne.s32.totalorder %s201, %s215
      %p217 = scmp.eq.s32.totalorder %s46, 0
      %p218 = por %p216, %p217
      %s220 = sadd.s32 %s219, 1
      %p223 = scmp.eq.s32.totalorder %s40, 7
      %p224 = scmp.ne.s32.totalorder %s219, %s221
      %p225 = scmp.eq.s32.totalorder %s40, 0
      %p226 = por %p224, %p225
      %p227 = scmp.ne.s32.totalorder %s219, %s221
      %p228 = scmp.eq.s32.totalorder %s45, 7
      %p229 = por %p227, %p228
      %p230 = scmp.ne.s32.totalorder %s221, %s222
      %p231 = scmp.eq.s32.totalorder %s45, 0
      %p232 = por %p230, %p231
      %p233 = scmp.ne.s32.totalorder %s221, %s222
      %p234 = scmp.eq.s32.totalorder %s46, 7
      %p235 = por %p233, %p234
      %p237 = scmp.ne.s32.totalorder %s222, %s236
      %p238 = scmp.eq.s32.totalorder %s46, 0
      %p239 = por %p237, %p238
      %p240 = scmp.le.s32.totalorder 1, %s40
      %p241 = scmp.lt.s32.totalorder %s40, 9
      %p242 = pnand %p240, %p241
      %p243 = pneg %p242
      // Predicated region
      $region9: #{tpu_custom_call.1} parent=5 // pred_check
        _
      $region10: #{tpu_custom_call.1} parent=5 // pred_check_branch
        %245 = sbr.rel (%p242) target = $region12
      $region11: #{tpu_custom_call.1} parent=5 // pred_region
        %s246 = ssub.s32 %s40, 1
        // Predicated region
        $region13: #{tpu_custom_call.1} parent=11 // pred_check
          %p247 = pneg %p117
        $region14: #{tpu_custom_call.1} parent=11 // pred_check_branch
          %249 = sbr.rel (%p247) target = $region16
        $region15: #{tpu_custom_call.1} parent=11 // pred_region
          %s251 = ssub.s32 16, 16
          %252 = vsyncadd [#allocation9], %s251
          %s254 = sshll.u32 %s4, 4
          %s255 = int_to_ptr.vmem [resolvable:$true] %s254
          %257 = dma.vmem_to_smem %s255, 16, [#allocation12], [#allocation9]
        $region16: #{tpu_custom_call.1} parent=11 // pred_fallthru
          _
        // Predicated region
        $region17: #{tpu_custom_call.1} parent=11 // pred_check
          %p258 = pneg %p138
        $region18: #{tpu_custom_call.1} parent=11 // pred_check_branch
          %260 = sbr.rel (%p258) target = $region20
        $region19: #{tpu_custom_call.1} parent=11 // pred_region
          %s262 = ssub.s32 16, 16
          %263 = vsyncadd [#allocation14], %s262
          %s265 = sshll.u32 %s5, 4
          %s266 = int_to_ptr.vmem [resolvable:$true] %s265
          %268 = dma.vmem_to_smem %s266, 16, [#allocation13], [#allocation14]
        $region20: #{tpu_custom_call.1} parent=11 // pred_fallthru
          _
      $region12: #{tpu_custom_call.1} parent=5 // pred_fallthru
        _
      %p269 = scmp.lt.s32.totalorder %s40, 8
      // Predicated region
      $region21: #{tpu_custom_call.1} parent=5 // pred_check
        %p270 = pneg %p269
      $region22: #{tpu_custom_call.1} parent=5 // pred_check_branch
        %272 = sbr.rel (%p270) target = $region24
      $region23: #{tpu_custom_call.1} parent=5 // pred_region
        // Predicated region
        $region25: #{tpu_custom_call.1} parent=23 // pred_check
          %p273 = pneg %p62
        $region26: #{tpu_custom_call.1} parent=23 // pred_check_branch
          %275 = sbr.rel (%p273) target = $region28
        $region27: #{tpu_custom_call.1} parent=23 // pred_region
          %s276 = sand.u32 %s52, 1
          %s277 = scalar_lea.sflag [#allocation6], %s276
          %s278 = sand.u32 %s52, 1
          %s279 = scalar_lea.vmem [#allocation5], %s278
          %s280 = sld [smem:[#allocation3 + %s40]]
          %s282 = ssub.s32 16, 16
          %283 = vsyncadd %s277, %s282
          %s284 = smul.addr %s280, 16
          %s285 = scalar_lea.hbm %s2, %s284
          %s287 = sshll.u32 %s279, 4
          %s288 = int_to_ptr.vmem [resolvable:$true] %s287
          %290 = dma.hbm_to_vmem [thread:$0]  %s285, 16, %s288, %s277
        $region28: #{tpu_custom_call.1} parent=23 // pred_fallthru
          _
        // Predicated region
        $region29: #{tpu_custom_call.1} parent=23 // pred_check
          %p291 = pneg %p90
        $region30: #{tpu_custom_call.1} parent=23 // pred_check_branch
          %293 = sbr.rel (%p291) target = $region32
        $region31: #{tpu_custom_call.1} parent=23 // pred_region
          %s294 = sand.u32 %s80, 1
          %s295 = scalar_lea.sflag [#allocation11], %s294
          %s296 = sand.u32 %s80, 1
          %s297 = scalar_lea.vmem [#allocation10], %s296
          %s298 = sld [smem:[#allocation4 + %s40]]
          %s300 = ssub.s32 16, 16
          %301 = vsyncadd %s295, %s300
          %s302 = smul.addr %s298, 16
          %s303 = scalar_lea.hbm %s3, %s302
          %s305 = sshll.u32 %s297, 4
          %s306 = int_to_ptr.vmem [resolvable:$true] %s305
          %308 = dma.hbm_to_vmem [thread:$0]  %s303, 16, %s306, %s295
        $region32: #{tpu_custom_call.1} parent=23 // pred_fallthru
          _
      $region24: #{tpu_custom_call.1} parent=5 // pred_fallthru
        _
      %p309 = scmp.le.s32.totalorder 1, %s40
      %p310 = scmp.lt.s32.totalorder %s40, 9
      %p311 = pnand %p309, %p310
      %p312 = pneg %p311
      // Predicated region
      $region33: #{tpu_custom_call.1} parent=5 // pred_check
        _
      $region34: #{tpu_custom_call.1} parent=5 // pred_check_branch
        %314 = sbr.rel (%p311) target = $region36
      $region35: #{tpu_custom_call.1} parent=5 // pred_region
        %s315 = ssub.s32 %s40, 1
        %s316 = sand.u32 %s55, 1
        %s317 = scalar_lea.sflag [#allocation6], %s316
        %s318 = sand.u32 %s55, 1
        %s319 = scalar_lea.vmem [#allocation5], %s318
        // Predicated region
        $region37: #{tpu_custom_call.1} parent=35 // pred_check
          %p320 = pneg %p68
        $region38: #{tpu_custom_call.1} parent=35 // pred_check_branch
          %322 = sbr.rel (%p320) target = $region40
        $region39: #{tpu_custom_call.1} parent=35 // pred_region
          %323 = dma.done %s317, 16
        $region40: #{tpu_custom_call.1} parent=35 // pred_fallthru
          _
        %s324 = sand.u32 %s83, 1
        %s325 = scalar_lea.sflag [#allocation11], %s324
        %s326 = sand.u32 %s83, 1
        %s327 = scalar_lea.vmem [#allocation10], %s326
        // Predicated region
        $region41: #{tpu_custom_call.1} parent=35 // pred_check
          %p328 = pneg %p96
        $region42: #{tpu_custom_call.1} parent=35 // pred_check_branch
          %330 = sbr.rel (%p328) target = $region44
        $region43: #{tpu_custom_call.1} parent=35 // pred_region
          %331 = dma.done %s325, 16
        $region44: #{tpu_custom_call.1} parent=35 // pred_fallthru
          _
        // Predicated region
        $region45: #{tpu_custom_call.1} parent=35 // pred_check
          %p332 = pneg %p117
        $region46: #{tpu_custom_call.1} parent=35 // pred_check_branch
          %334 = sbr.rel (%p332) target = $region48
        $region47: #{tpu_custom_call.1} parent=35 // pred_region
          %335 = dma.done [#allocation9], 16
        $region48: #{tpu_custom_call.1} parent=35 // pred_fallthru
          _
        // Predicated region
        $region49: #{tpu_custom_call.1} parent=35 // pred_check
          %p336 = pneg %p138
        $region50: #{tpu_custom_call.1} parent=35 // pred_check_branch
          %338 = sbr.rel (%p336) target = $region52
        $region51: #{tpu_custom_call.1} parent=35 // pred_region
          %339 = dma.done [#allocation14], 16
        $region52: #{tpu_custom_call.1} parent=35 // pred_fallthru
          _
        %340 = sfence
        %s341 = sand.u32 %s55, 1
        %s342 = scalar_lea.sflag [#allocation6], %s341
        %s343 = sand.u32 %s55, 1
        %s344 = scalar_lea.vmem [#allocation5], %s343
        %p345 = pneg %p68
        %p346 = pneg %p65
        %s347 = sand.u32 %s83, 1
        %s348 = scalar_lea.sflag [#allocation11], %s347
        %s349 = sand.u32 %s83, 1
        %s350 = scalar_lea.vmem [#allocation10], %s349
        %p351 = pneg %p96
        %p352 = pneg %p93
        %p353 = pneg %p117
        %p354 = pneg %p114
        %p355 = pneg %p138
        %p356 = pneg %p135
        %p357 = pneg %p164
        %p358 = pneg %p161
        %s359 = sand.u32 %s151, 1
        %s360 = scalar_lea.sflag [#allocation7], %s359
        %s361 = sand.u32 %s151, 1
        %s362 = scalar_lea.vmem [#allocation15], %s361
        %p363 = pneg %p190
        %p364 = pneg %p187
        %s365 = sand.u32 %s177, 1
        %s366 = scalar_lea.sflag [#allocation17], %s365
        %s367 = sand.u32 %s177, 1
        %s368 = scalar_lea.vmem [#allocation16], %s367
        %p369 = pneg %p211
        %p370 = pneg %p208
        %p371 = pneg %p232
        %p372 = pneg %p229
        %s373 = sld [smem:[#allocation3 + %s45]]
        %s374 = sld [smem:[#allocation4 + %s45]]
        %p375 = scmp.eq.s32.totalorder %s45, 0
        // Predicated region
        $region53: #{tpu_custom_call.1} parent=35 // pred_check
          %p376 = pneg %p375
        $region54: #{tpu_custom_call.1} parent=35 // pred_check_branch
          %378 = sbr.rel (%p376) target = $region56
        $region55: #{tpu_custom_call.1} parent=35 // pred_region
          loop: start=0, step=1, limit=32
          $region57: #{tpu_custom_call.1} parent=55 // loop_pre_header
            _
          $region58: #{tpu_custom_call.1} parent=55 // loop_header
            %s380 = sphi 0, %s384
            %p381 = scmp.ge.s32.totalorder %s380, 32
          $region59: #{tpu_custom_call.1} parent=55 // loop_header_branch
            %383 = sbr.rel (%p381) target = $region63
          $region60: #{tpu_custom_call.1} parent=55 // loop_body
            %s385 = sld [smem:[#allocation12 + %s380]]
            %s386 = scalar_lea.smem [#allocation18], %s380
            %387 = sst [smem:[%s386]] %s385
          $region61: #{tpu_custom_call.1} parent=55 // loop_footer
            %s384 = sadd.s32 1, %s380
          $region62: #{tpu_custom_call.1} parent=55 // loop_footer_branch
            %379 = sbr.rel target = $region58
          $region63: #{tpu_custom_call.1} parent=55 // loop_exit
            _
          loop: start=0, step=1, limit=8
          $region64: #{tpu_custom_call.1} parent=55 // loop_pre_header
            _
          $region65: #{tpu_custom_call.1} parent=55 // loop_header
            %s389 = sphi 0, %s393
            %p390 = scmp.ge.s32.totalorder %s389, 8
          $region66: #{tpu_custom_call.1} parent=55 // loop_header_branch
            %392 = sbr.rel (%p390) target = $region70
          $region67: #{tpu_custom_call.1} parent=55 // loop_body
            %s394 = sld [smem:[#allocation13 + %s389]]
            %s395 = scalar_lea.smem [#allocation19], %s389
            %396 = sst [smem:[%s395]] %s394
          $region68: #{tpu_custom_call.1} parent=55 // loop_footer
            %s393 = sadd.s32 1, %s389
          $region69: #{tpu_custom_call.1} parent=55 // loop_footer_branch
            %388 = sbr.rel target = $region65
          $region70: #{tpu_custom_call.1} parent=55 // loop_exit
            _
        $region56: #{tpu_custom_call.1} parent=35 // pred_fallthru
          _
        %v397 = vld [vmem:[%s319] sm:$0x1]
        %vm398 = vcmask 253952
        %399 = vst.msk [vmem:[%s362] sm:$0x1] %vm398, %v397
        %v400 = vld [vmem:[%s327] sm:$0x1]
        %401 = vst.msk [vmem:[%s368] sm:$0x1] %vm398, %v400
        %s402 = sld [smem:[#allocation3 + %s45]]
        %s403 = scalar_lea.smem [#allocation18], %s402
        %404 = sst [smem:[%s403]] 1
        %s405 = sld [smem:[#allocation4 + %s45]]
        %s406 = scalar_lea.smem [#allocation19], %s405
        %407 = sst [smem:[%s406]] 1
        %s408 = sand.u32 %s151, 1
        %s409 = scalar_lea.sflag [#allocation7], %s408
        %s410 = sand.u32 %s151, 1
        %s411 = scalar_lea.vmem [#allocation15], %s410
        %s412 = sand.u32 %s177, 1
        %s413 = scalar_lea.sflag [#allocation17], %s412
        %s414 = sand.u32 %s177, 1
        %s415 = scalar_lea.vmem [#allocation16], %s414
        // Predicated region
        $region71: #{tpu_custom_call.1} parent=35 // pred_check
          %p416 = pneg %p161
        $region72: #{tpu_custom_call.1} parent=35 // pred_check_branch
          %418 = sbr.rel (%p416) target = $region74
        $region73: #{tpu_custom_call.1} parent=35 // pred_region
          %s420 = ssub.s32 16, 16
          %421 = vsyncadd %s409, %s420
          %s422 = smul.addr %s45, 16
          %s423 = scalar_lea.hbm %s6, %s422
          %s425 = sshll.u32 %s411, 4
          %s426 = int_to_ptr.vmem [resolvable:$true] %s425
          %428 = dma.vmem_to_hbm [thread:$0]  %s426, 16, %s423, %s409
        $region74: #{tpu_custom_call.1} parent=35 // pred_fallthru
          _
        // Predicated region
        $region75: #{tpu_custom_call.1} parent=35 // pred_check
          %p429 = pneg %p187
        $region76: #{tpu_custom_call.1} parent=35 // pred_check_branch
          %431 = sbr.rel (%p429) target = $region78
        $region77: #{tpu_custom_call.1} parent=35 // pred_region
          %s433 = ssub.s32 16, 16
          %434 = vsyncadd %s413, %s433
          %s435 = smul.addr %s45, 16
          %s436 = scalar_lea.hbm %s7, %s435
          %s438 = sshll.u32 %s415, 4
          %s439 = int_to_ptr.vmem [resolvable:$true] %s438
          %441 = dma.vmem_to_hbm [thread:$0]  %s439, 16, %s436, %s413
        $region78: #{tpu_custom_call.1} parent=35 // pred_fallthru
          _
        // Predicated region
        $region79: #{tpu_custom_call.1} parent=35 // pred_check
          %p442 = pneg %p208
        $region80: #{tpu_custom_call.1} parent=35 // pred_check_branch
          %444 = sbr.rel (%p442) target = $region82
        $region81: #{tpu_custom_call.1} parent=35 // pred_region
          %s446 = ssub.s32 16, 16
          %447 = vsyncadd [#allocation8], %s446
          %450 = dma.smem_to_hbm [#allocation18], 16, %s8, [#allocation8]
        $region82: #{tpu_custom_call.1} parent=35 // pred_fallthru
          _
        // Predicated region
        $region83: #{tpu_custom_call.1} parent=35 // pred_check
          %p451 = pneg %p229
        $region84: #{tpu_custom_call.1} parent=35 // pred_check_branch
          %453 = sbr.rel (%p451) target = $region86
        $region85: #{tpu_custom_call.1} parent=35 // pred_region
          %s455 = ssub.s32 16, 16
          %456 = vsyncadd [#allocation20], %s455
          %459 = dma.smem_to_hbm [#allocation19], 16, %s9, [#allocation20]
        $region86: #{tpu_custom_call.1} parent=35 // pred_fallthru
          _
        // Predicated region
        $region87: #{tpu_custom_call.1} parent=35 // pred_check
          %p460 = pneg %p208
        $region88: #{tpu_custom_call.1} parent=35 // pred_check_branch
          %462 = sbr.rel (%p460) target = $region90
        $region89: #{tpu_custom_call.1} parent=35 // pred_region
          %463 = dma.done [#allocation8], 16
        $region90: #{tpu_custom_call.1} parent=35 // pred_fallthru
          _
        // Predicated region
        $region91: #{tpu_custom_call.1} parent=35 // pred_check
          %p464 = pneg %p229
        $region92: #{tpu_custom_call.1} parent=35 // pred_check_branch
          %466 = sbr.rel (%p464) target = $region94
        $region93: #{tpu_custom_call.1} parent=35 // pred_region
          %467 = dma.done [#allocation20], 16
        $region94: #{tpu_custom_call.1} parent=35 // pred_fallthru
          _
        %468 = sfence
      $region36: #{tpu_custom_call.1} parent=5 // pred_fallthru
        _
      %p469 = scmp.le.s32.totalorder 2, %s40
      // Predicated region
      $region95: #{tpu_custom_call.1} parent=5 // pred_check
        %p470 = pneg %p469
      $region96: #{tpu_custom_call.1} parent=5 // pred_check_branch
        %472 = sbr.rel (%p470) target = $region98
      $region97: #{tpu_custom_call.1} parent=5 // pred_region
        %s473 = ssub.s32 %s40, 2
        // Predicated region
        $region99: #{tpu_custom_call.1} parent=97 // pred_check
          %p474 = pneg %p167
        $region100: #{tpu_custom_call.1} parent=97 // pred_check_branch
          %476 = sbr.rel (%p474) target = $region102
        $region101: #{tpu_custom_call.1} parent=97 // pred_region
          %s477 = sand.u32 %s152, 1
          %s478 = scalar_lea.sflag [#allocation7], %s477
          %s479 = sand.u32 %s152, 1
          %s480 = scalar_lea.vmem [#allocation15], %s479
          %481 = dma.done %s478, 16
        $region102: #{tpu_custom_call.1} parent=97 // pred_fallthru
          _
        // Predicated region
        $region103: #{tpu_custom_call.1} parent=97 // pred_check
          %p482 = pneg %p193
        $region104: #{tpu_custom_call.1} parent=97 // pred_check_branch
          %484 = sbr.rel (%p482) target = $region106
        $region105: #{tpu_custom_call.1} parent=97 // pred_region
          %s485 = sand.u32 %s178, 1
          %s486 = scalar_lea.sflag [#allocation17], %s485
          %s487 = sand.u32 %s178, 1
          %s488 = scalar_lea.vmem [#allocation16], %s487
          %489 = dma.done %s486, 16
        $region106: #{tpu_custom_call.1} parent=97 // pred_fallthru
          _
      $region98: #{tpu_custom_call.1} parent=5 // pred_fallthru
        _
    $region6: #{tpu_custom_call.1} parent=1 // loop_footer
      %s44 = sadd.s32 1, %s40
    $region7: #{tpu_custom_call.1} parent=1 // loop_footer_branch
      %39 = sbr.rel target = $region3
    $region8: #{tpu_custom_call.1} parent=1 // loop_exit
      _
    %490 = vsyncpa [#allocation6], 1
    %s491 = scalar_lea.sflag [#allocation6], 1
    %492 = vsyncpa %s491, 1
    %493 = vsyncpa [#allocation11], 1
    %s494 = scalar_lea.sflag [#allocation11], 1
    %495 = vsyncpa %s494, 1
    %496 = vsyncpa [#allocation7], 1
    %s497 = scalar_lea.sflag [#allocation7], 1
    %498 = vsyncpa %s497, 1
    %499 = vsyncpa [#allocation17], 1
    %s500 = scalar_lea.sflag [#allocation17], 1
    %501 = vsyncpa %s500, 1
    %502 = vsyncpa [#allocation8], 1
    %s503 = scalar_lea.sflag [#allocation8], 1
    %504 = vsyncpa %s503, 1
    %505 = vsyncpa [#allocation20], 1
    %506 = vsyncpa [#allocation9], 1
    %s507 = scalar_lea.sflag [#allocation9], 1
    %508 = vsyncpa %s507, 1
    %509 = vsyncpa [#allocation14], 1

</llo_original>
